<compile_context>
chip_gen: v6e
topology: v6e:2x2x1
jax: 0.10.0
libtpu: 0.0.40
codegen_flags: <defaults>
</compile_context>

<pallas_src>
import jax
import jax.numpy as jnp
from jax.experimental import pallas as pl
from jax.experimental.pallas import tpu as pltpu

ALPHA = 0.25
GAMMA = 2.0           # implemented as an explicit square in the kernel

LANES = 128           # lane (last) dim of every tile
MAX_TILE_ROWS = 8192  # (8192, 128) f32 = 4 MiB per pipeline buffer
NUM_PARALLEL = 2      # leading "parallel" grid axis (both TensorCores on v7x)
PAD_LOGIT = -1.0e4    # with target 0 this yields exactly zero focal loss


def _round_up(x, m):
    return ((x + m - 1) // m) * m


def _focal_loss_kernel(logit_ref, target_ref, out_ref, acc_ref):
    i = pl.program_id(1)

    @pl.when(i == 0)
    def _init():
        acc_ref[...] = jnp.zeros_like(acc_ref)

    x = logit_ref[...]                         # (tile_rows, 128) f32 logits
    t = target_ref[...].astype(jnp.float32)    # (tile_rows, 128) labels {0,1}

    # Numerically stable binary_cross_entropy_with_logits (matches PyTorch):
    #   bce = max(x, 0) - x*t + log1p(exp(-|x|))
    z = jnp.exp(-jnp.abs(x))
    bce = jnp.maximum(x, 0.0) - x * t + jnp.log1p(z)

    # pt = exp(-bce) = where(sign(x) matches t, 1, z) / (1 + z); we only need
    #   1 - pt = where(sign(x) matches t, z, 1) / (1 + z)
    # This drops the second exp (EUP push) per element.
    mismatch = jnp.logical_xor(x >= 0.0, t > 0.5)
    inv_1pz = pl.reciprocal(1.0 + z, approx=False)   # exact: stay in 1e-5 tol
    one_minus_pt = jnp.where(mismatch, 1.0, z) * inv_1pz

    alpha_factor = (1.0 - ALPHA) + (2.0 * ALPHA - 1.0) * t    # 0.75 - 0.5*t
    f_loss = alpha_factor * (one_minus_pt * one_minus_pt) * bce   # gamma == 2

    # Fold this tile's rows into the (8, 128) accumulator with plain VPU adds
    # (sublane-group fold; no cross-lane XLU reduce inside the grid loop).
    acc_ref[...] += f_loss.reshape(-1, 8, LANES).sum(axis=0)

    @pl.when(i == pl.num_programs(1) - 1)
    def _finalize():
        out_ref[0, :, :] = acc_ref[...]


@jax.jit
def focal_loss(inputs, targets):
    """inputs: (N, 2) float logits; targets: (N,) int/bool 0-1 labels."""
    n = inputs.shape[0]

    # TODO(synk): fuse this pre-pass into the kernel (contiguous (N,2) ->
    # (rows,256) view + in-kernel lane de-interleave on the idle XLU) to remove
    # the remaining XLA column-extract/pad traffic; here it is at least one
    # fused XLA pass and targets are narrowed to int8 (1 B/elem in + out).
    logits = inputs[:, 1].astype(jnp.float32)
    tgt = targets.astype(jnp.int8)

    rows = pl.cdiv(n, LANES)
    # Split rows over a (NUM_PARALLEL, inner) grid of tile_rows-row tiles, with
    # tile_rows a multiple of 32 (f32 + int8 tilings) and minimal padding.
    inner = pl.cdiv(rows, NUM_PARALLEL * MAX_TILE_ROWS)
    tile_rows = min(MAX_TILE_ROWS,
                    _round_up(pl.cdiv(rows, NUM_PARALLEL * inner), 32))
    padded_rows = NUM_PARALLEL * inner * tile_rows
    padded_n = padded_rows * LANES

    # Padded tail: logit = -1e4 with target = 0 gives exactly zero loss, so the
    # kernel needs no tail mask (and no N baked in).
    logits = jnp.pad(logits, (0, padded_n - n),
                     constant_values=PAD_LOGIT).reshape(padded_rows, LANES)
    tgt = jnp.pad(tgt, (0, padded_n - n)).reshape(padded_rows, LANES)

    partial = pl.pallas_call(
        _focal_loss_kernel,
        out_shape=jax.ShapeDtypeStruct((NUM_PARALLEL, 8, LANES), jnp.float32),
        grid_spec=pltpu.PrefetchScalarGridSpec(
            num_scalar_prefetch=0,
            grid=(NUM_PARALLEL, inner),
            in_specs=[
                pl.BlockSpec((tile_rows, LANES),
                             lambda p, i: (p * inner + i, 0)),
                pl.BlockSpec((tile_rows, LANES),
                             lambda p, i: (p * inner + i, 0)),
            ],
            out_specs=pl.BlockSpec((1, 8, LANES), lambda p, i: (p, 0, 0)),
            scratch_shapes=[pltpu.VMEM((8, LANES), jnp.float32)],
        ),
        compiler_params=pltpu.CompilerParams(
            dimension_semantics=("parallel", "arbitrary"),
        ),
        cost_estimate=pl.CostEstimate(
            flops=16 * padded_n,
            transcendentals=3 * padded_n,
            bytes_accessed=5 * padded_n + NUM_PARALLEL * 8 * LANES * 4),
    )(logits, tgt)

    # Tiny cross-lane/sublane reduce + mean over the true N (reduction='mean').
    return jnp.sum(partial) / jnp.float32(n)


def _reference_focal_loss(inputs, targets):
    x = inputs[:, 1].astype(jnp.float32)
    t = targets.astype(jnp.float32)
    bce = jnp.maximum(x, 0.0) - x * t + jnp.log1p(jnp.exp(-jnp.abs(x)))
    pt = jnp.exp(-bce)
    alpha_factor = jnp.where(t == 1.0, ALPHA, 1.0 - ALPHA)
    return jnp.mean(alpha_factor * (1.0 - pt) ** GAMMA * bce)


if __name__ == "__main__":
    key = jax.random.PRNGKey(0)
    k1, k2 = jax.random.split(key)

    # Small shape consistent with the module: (N, 2) logits, (N,) 0/1 labels.
    N = 8
    inputs = jax.random.normal(k1, (N, 2), dtype=jnp.float32)
    targets = jax.random.bernoulli(k2, 0.5, (N,)).astype(jnp.int32)

    loss = focal_loss(inputs, targets)
    jax.block_until_ready(loss)
    ref = _reference_focal_loss(inputs, targets)
    assert jnp.allclose(loss, ref, atol=1e-5, rtol=1e-5), (loss, ref)

    # Larger, non-multiple-of-tile N: exercises padding + the 2-way parallel split.
    k3, k4 = jax.random.split(k2)
    N2 = 200_000
    inputs2 = jax.random.normal(k3, (N2, 2), dtype=jnp.float32)
    targets2 = jax.random.bernoulli(k4, 0.5, (N2,)).astype(jnp.int32)
    loss2 = focal_loss(inputs2, targets2)
    jax.block_until_ready(loss2)
    ref2 = _reference_focal_loss(inputs2, targets2)
    assert jnp.allclose(loss2, ref2, atol=1e-5, rtol=1e-5), (loss2, ref2)

    # Large enough that each parallel slot runs multiple inner grid steps:
    # exercises the resident VMEM accumulator across the "arbitrary" axis.
    k5, k6 = jax.random.split(k4)
    N3 = 2_200_000
    inputs3 = jax.random.normal(k5, (N3, 2), dtype=jnp.float32)
    targets3 = jax.random.bernoulli(k6, 0.5, (N3,)).astype(jnp.int32)
    loss3 = focal_loss(inputs3, targets3)
    jax.block_until_ready(loss3)
    ref3 = _reference_focal_loss(inputs3, targets3)
    assert jnp.allclose(loss3, ref3, atol=1e-5, rtol=1e-5), (loss3, ref3)

    print("KERNEL_OK")
</pallas_src>

<mosaic_0001>
module attributes {stable_mosaic.version = 11 : i64} {
  func.func @_focal_loss_kernel(%arg0: i32, %arg1: i32, %arg2: memref<32x128xf32, #tpu.memory_space<vmem>>, %arg3: memref<32x128xi8, #tpu.memory_space<vmem>>, %arg4: memref<1x8x128xf32, #tpu.memory_space<vmem>>, %arg5: memref<8x128xf32, #tpu.memory_space<vmem>>) attributes {dimension_semantics = [#tpu.dimension_semantics<parallel>, #tpu.dimension_semantics<arbitrary>], iteration_bounds = array<i64: 2, 1>, scalar_prefetch = 0 : i64, scratch_operands = 1 : i64, tpu.core_type = #tpu.core_type<tc>, window_params = [{transform_indices = @transform_0, window_bounds = array<i64: 32, 128>}, {transform_indices = @transform_1, window_bounds = array<i64: 32, 128>}, {transform_indices = @transform_2, window_bounds = array<i64: 1, 8, 128>}]} {
    %c0_i32 = arith.constant 0 : i32
    %0 = arith.cmpi eq, %arg1, %c0_i32 : i32
    %1 = arith.extui %0 : i1 to i32
    %c0_i32_0 = arith.constant 0 : i32
    %2 = arith.cmpi ne, %1, %c0_i32_0 : i32
    scf.if %2 {
      %cst_18 = arith.constant 0.000000e+00 : f32
      %42 = vector.broadcast %cst_18 : f32 to vector<8x128xf32>
      %c0_19 = arith.constant 0 : index
      %c0_20 = arith.constant 0 : index
      %43 = vector.load %arg5[%c0_19, %c0_20] : memref<8x128xf32, #tpu.memory_space<vmem>>, vector<8x128xf32>
      tpu.vector_store %arg5[%c0_19, %c0_20], %42 {strides = array<i32>} : memref<8x128xf32, #tpu.memory_space<vmem>>, vector<8x128xf32>,
    } else {
    }
    %c0 = arith.constant 0 : index
    %c0_1 = arith.constant 0 : index
    %3 = vector.load %arg2[%c0, %c0_1] : memref<32x128xf32, #tpu.memory_space<vmem>>, vector<32x128xf32>
    %c0_2 = arith.constant 0 : index
    %c0_3 = arith.constant 0 : index
    %4 = vector.load %arg3[%c0_2, %c0_3] : memref<32x128xi8, #tpu.memory_space<vmem>>, vector<32x128xi8>
    %5 = arith.sitofp %4 : vector<32x128xi8> to vector<32x128xf32>
    %6 = math.absf %3 : vector<32x128xf32>
    %cst = arith.constant 0.000000e+00 : f32
    %7 = vector.broadcast %cst : f32 to vector<32x128xf32>
    %8 = arith.subf %7, %6 : vector<32x128xf32>
    %9 = math.exp %8 : vector<32x128xf32>
    %cst_4 = arith.constant 0.000000e+00 : f32
    %10 = vector.broadcast %cst_4 : f32 to vector<32x128xf32>
    %11 = arith.maximumf %3, %10 : vector<32x128xf32>
    %12 = arith.mulf %3, %5 : vector<32x128xf32>
    %13 = arith.subf %11, %12 : vector<32x128xf32>
    %14 = math.log1p %9 : vector<32x128xf32>
    %15 = arith.addf %13, %14 : vector<32x128xf32>
    %cst_5 = arith.constant 0.000000e+00 : f32
    %16 = vector.broadcast %cst_5 : f32 to vector<32x128xf32>
    %17 = arith.cmpf oge, %3, %16 : vector<32x128xf32>
    %cst_6 = arith.constant 5.000000e-01 : f32
    %18 = vector.broadcast %cst_6 : f32 to vector<32x128xf32>
    %19 = arith.cmpf ogt, %5, %18 : vector<32x128xf32>
    %20 = arith.xori %17, %19 : vector<32x128xi1>
    %cst_7 = arith.constant 1.000000e+00 : f32
    %21 = vector.broadcast %cst_7 : f32 to vector<32x128xf32>
    %22 = arith.addf %21, %9 : vector<32x128xf32>
    %23 = tpu.reciprocal %22 : vector<32x128xf32> -> vector<32x128xf32>
    %cst_8 = arith.constant 1.000000e+00 : f32
    %24 = vector.broadcast %cst_8 : f32 to vector<32x128xf32>
    %25 = arith.select %20, %24, %9 : vector<32x128xi1>, vector<32x128xf32>
    %26 = arith.mulf %25, %23 : vector<32x128xf32>
    %cst_9 = arith.constant -5.000000e-01 : f32
    %27 = vector.broadcast %cst_9 : f32 to vector<32x128xf32>
    %28 = arith.mulf %27, %5 : vector<32x128xf32>
    %cst_10 = arith.constant 7.500000e-01 : f32
    %29 = vector.broadcast %cst_10 : f32 to vector<32x128xf32>
    %30 = arith.addf %29, %28 : vector<32x128xf32>
    %31 = arith.mulf %26, %26 : vector<32x128xf32>
    %32 = arith.mulf %30, %31 : vector<32x128xf32>
    %33 = arith.mulf %32, %15 : vector<32x128xf32>
    %c0_11 = arith.constant 0 : index
    %c0_12 = arith.constant 0 : index
    %34 = vector.load %arg5[%c0_11, %c0_12] : memref<8x128xf32, #tpu.memory_space<vmem>>, vector<8x128xf32>
    %35 = vector.shape_cast %33 : vector<32x128xf32> to vector<4x8x128xf32>
    %cst_13 = arith.constant dense<0.000000e+00> : vector<8x128xf32>
    %36 = vector.multi_reduction <add>, %35, %cst_13 [0] : vector<4x8x128xf32> to vector<8x128xf32>
    %37 = arith.addf %34, %36 : vector<8x128xf32>
    %c0_14 = arith.constant 0 : index
    %c0_15 = arith.constant 0 : index
    %38 = vector.load %arg5[%c0_14, %c0_15] : memref<8x128xf32, #tpu.memory_space<vmem>>, vector<8x128xf32>
    tpu.vector_store %arg5[%c0_14, %c0_15], %37 {strides = array<i32>} : memref<8x128xf32, #tpu.memory_space<vmem>>, vector<8x128xf32>,
    %c0_i32_16 = arith.constant 0 : i32
    %39 = arith.cmpi eq, %arg1, %c0_i32_16 : i32
    %40 = arith.extui %39 : i1 to i32
    %c0_i32_17 = arith.constant 0 : i32
    %41 = arith.cmpi ne, %40, %c0_i32_17 : i32
    scf.if %41 {
      %c0_18 = arith.constant 0 : index
      %c0_19 = arith.constant 0 : index
      %42 = vector.load %arg5[%c0_18, %c0_19] : memref<8x128xf32, #tpu.memory_space<vmem>>, vector<8x128xf32>
      %c0_20 = arith.constant 0 : index
      %c0_21 = arith.constant 0 : index
      %c0_22 = arith.constant 0 : index
      %43 = vector.load %arg4[%c0_20, %c0_21, %c0_22] : memref<1x8x128xf32, #tpu.memory_space<vmem>>, vector<1x8x128xf32>
      %44 = vector.shape_cast %43 : vector<1x8x128xf32> to vector<8x128xf32>
      %45 = vector.shape_cast %42 : vector<8x128xf32> to vector<1x8x128xf32>
      tpu.vector_store %arg4[%c0_20, %c0_21, %c0_22], %45 {strides = array<i32>} : memref<1x8x128xf32, #tpu.memory_space<vmem>>, vector<1x8x128xf32>,
    } else {
    }
    return
  }
  func.func @transform_0(%arg0: i32, %arg1: i32) -> (i32, i32) {
    %c1_i32 = arith.constant 1 : i32
    %0 = arith.muli %arg0, %c1_i32 : i32
    %1 = arith.addi %0, %arg1 : i32
    %c0_i32 = arith.constant 0 : i32
    %c0_i32_0 = arith.constant 0 : i32
    return %1, %c0_i32 : i32, i32
  }
  func.func @transform_1(%arg0: i32, %arg1: i32) -> (i32, i32) {
    %c1_i32 = arith.constant 1 : i32
    %0 = arith.muli %arg0, %c1_i32 : i32
    %1 = arith.addi %0, %arg1 : i32
    %c0_i32 = arith.constant 0 : i32
    %c0_i32_0 = arith.constant 0 : i32
    return %1, %c0_i32 : i32, i32
  }
  func.func @transform_2(%arg0: i32, %arg1: i32) -> (i32, i32, i32) {
    %c0_i32 = arith.constant 0 : i32
    %c0_i32_0 = arith.constant 0 : i32
    %c0_i32_1 = arith.constant 0 : i32
    return %arg0, %c0_i32, %c0_i32_0 : i32, i32, i32
  }
}

</mosaic_0001>

<llo_original>
// kernel: focal_loss.1
$region0: #{focal_loss.1}
  #allocation0 [shape = 'u32[]', space=smem, size = 0x4, offset = 0x4, fixed_abs, tag = 'smem constant byte address 0x4 - core index']
  #allocation1 [shape = 'u32[144,128]{1,0:T(1,128)}', space=vmem, size = 0x12000, scoped, tag = 'internal scratch']
  #allocation2 [shape = 'f32[8,128]{1,0:T(8,128)}', space=vmem, size = 0x1000, scoped, tag = 'scratch operand']
  %s0 = inlined_call_operand.vmem [shape: f32[64,128], index: 0, kind: input, shape index: {}]
  %s1 = inlined_call_operand.vmem [shape: s8[64,128], index: 1, kind: input, shape index: {}]
  %s2 = inlined_call_operand.vmem [shape: f32[2,8,128], index: 2, kind: output, shape index: {}]
  %s3 = sld [smem:[#allocation0]]
  $region49: #{focal_loss.1} parent=0
    _
  %s5 = ssub.s32 1, %s3
  %s6 = scalar_select 0, %s5, %s3
  loop: start=0, step=1, limit=4
  $region2: #{focal_loss.1} parent=0 // loop_pre_header
    _
  $region3: #{focal_loss.1} parent=0 // loop_header
    %s8 = sphi 0, %s12
    %p9 = scmp.ge.s32.totalorder %s8, 4
    %s15 = sphi 0, %s27
    %s16 = sphi 0, %s23
    %s17 = sphi 0, %s15
    %s18 = sphi 0, %s16
    %s19 = sphi 0, %s17
    %s20 = sphi 0, %s18
    %s32 = sphi 0, %s34
    %s35 = sphi 0, %s32
    %s36 = sphi 0, %s35
    %s52 = sphi 0, %s36
    %s60 = sphi 0, %s62
    %s63 = sphi 0, %s60
    %s64 = sphi 0, %s63
    %s80 = sphi 0, %s64
    %s86 = sphi 0, %s88
    %s89 = sphi 0, %s86
    %s90 = sphi 0, %s89
    %s106 = sphi 0, %s90
  $region4: #{focal_loss.1} parent=0 // loop_header_branch
    %11 = sbr.rel (%p9) target = $region8
  $region5: #{focal_loss.1} parent=0 // loop_body
    %s13 = ssub.s32 %s8, 1
    %s14 = ssub.s32 %s8, 2
    %s21 = sadd.s32 1, %s16
    %p22 = scmp.ge.s32.totalorder %s21, 1
    %s23 = scalar_select %p22, 0, %s21
    %s24 = sadd.s32 1, %s15
    %s25 = scalar_select %p22, %s24, %s15
    %p26 = scmp.ge.s32.totalorder %s25, 2
    %s27 = scalar_select %p26, 0, %s25
    %s28 = sadd.s32 %s15, %s16
    %s29 = sadd.s32 %s27, %s23
    %s30 = ssub.s32 %s28, %s29
    %p31 = scmp.eq.s32.totalorder %s30, 0
    %s33 = sadd.s32 %s32, 1
    %s34 = scalar_select %p31, %s32, %s33
    %p37 = pneg %p31
    %p38 = scmp.eq.s32.totalorder %s8, 1
    %p39 = por %p37, %p38
    %p40 = scmp.ne.s32.totalorder %s32, %s35
    %p41 = scmp.eq.s32.totalorder %s8, 0
    %p42 = por %p40, %p41
    %p43 = scmp.ne.s32.totalorder %s32, %s35
    %p44 = scmp.eq.s32.totalorder %s13, 1
    %p45 = por %p43, %p44
    %p46 = scmp.ne.s32.totalorder %s35, %s36
    %p47 = scmp.eq.s32.totalorder %s13, 0
    %p48 = por %p46, %p47
    %p49 = scmp.ne.s32.totalorder %s35, %s36
    %p50 = scmp.eq.s32.totalorder %s14, 1
    %p51 = por %p49, %p50
    %p53 = scmp.ne.s32.totalorder %s36, %s52
    %p54 = scmp.eq.s32.totalorder %s14, 0
    %p55 = por %p53, %p54
    %s56 = sadd.s32 %s15, %s16
    %s57 = sadd.s32 %s27, %s23
    %s58 = ssub.s32 %s56, %s57
    %p59 = scmp.eq.s32.totalorder %s58, 0
    %s61 = sadd.s32 %s60, 1
    %s62 = scalar_select %p59, %s60, %s61
    %p65 = pneg %p59
    %p66 = scmp.eq.s32.totalorder %s8, 1
    %p67 = por %p65, %p66
    %p68 = scmp.ne.s32.totalorder %s60, %s63
    %p69 = scmp.eq.s32.totalorder %s8, 0
    %p70 = por %p68, %p69
    %p71 = scmp.ne.s32.totalorder %s60, %s63
    %p72 = scmp.eq.s32.totalorder %s13, 1
    %p73 = por %p71, %p72
    %p74 = scmp.ne.s32.totalorder %s63, %s64
    %p75 = scmp.eq.s32.totalorder %s13, 0
    %p76 = por %p74, %p75
    %p77 = scmp.ne.s32.totalorder %s63, %s64
    %p78 = scmp.eq.s32.totalorder %s14, 1
    %p79 = por %p77, %p78
    %p81 = scmp.ne.s32.totalorder %s64, %s80
    %p82 = scmp.eq.s32.totalorder %s14, 0
    %p83 = por %p81, %p82
    %s84 = ssub.s32 %s15, %s27
    %p85 = scmp.eq.s32.totalorder %s84, 0
    %s87 = sadd.s32 %s86, 1
    %s88 = scalar_select %p85, %s86, %s87
    %p91 = pneg %p85
    %p92 = scmp.eq.s32.totalorder %s8, 1
    %p93 = por %p91, %p92
    %p94 = scmp.ne.s32.totalorder %s86, %s89
    %p95 = scmp.eq.s32.totalorder %s8, 0
    %p96 = por %p94, %p95
    %p97 = scmp.ne.s32.totalorder %s86, %s89
    %p98 = scmp.eq.s32.totalorder %s13, 1
    %p99 = por %p97, %p98
    %p100 = scmp.ne.s32.totalorder %s89, %s90
    %p101 = scmp.eq.s32.totalorder %s13, 0
    %p102 = por %p100, %p101
    %p103 = scmp.ne.s32.totalorder %s89, %s90
    %p104 = scmp.eq.s32.totalorder %s14, 1
    %p105 = por %p103, %p104
    %p107 = scmp.ne.s32.totalorder %s90, %s106
    %p108 = scmp.eq.s32.totalorder %s14, 0
    %p109 = por %p107, %p108
    %p110 = scmp.le.s32.totalorder 1, %s8
    %p111 = scmp.lt.s32.totalorder %s8, 3
    %p112 = pnand %p110, %p111
    %p113 = pneg %p112
    // Predicated region
    $region9: #{focal_loss.1} parent=5 // pred_check
      _
    $region10: #{focal_loss.1} parent=5 // pred_check_branch
      %115 = sbr.rel (%p112) target = $region12
    $region11: #{focal_loss.1} parent=5 // pred_region
      %s116 = ssub.s32 %s8, 1
    $region12: #{focal_loss.1} parent=5 // pred_fallthru
      _
    %p117 = scmp.lt.s32.totalorder %s8, 2
    // Predicated region
    $region13: #{focal_loss.1} parent=5 // pred_check
      %p118 = pneg %p117
    $region14: #{focal_loss.1} parent=5 // pred_check_branch
      %120 = sbr.rel (%p118) target = $region16
    $region15: #{focal_loss.1} parent=5 // pred_region
      // Predicated region
      $region17: #{focal_loss.1} parent=15 // pred_check
        %p121 = pneg %p42
      $region18: #{focal_loss.1} parent=15 // pred_check_branch
        %123 = sbr.rel (%p121) target = $region20
      $region19: #{focal_loss.1} parent=15 // pred_region
        %s124 = sadd.s32 %s15, %s16
        %s125 = smul.u32 4, %s124
        %p126 = scmp.lt.s32.totalorder %s125, 7
        %s127 = scalar_select %p126, %s125, 7
        %s128 = smul.addr %s127, 8
        %s129 = scalar_lea.vmem %s0, %s128
        %s130 = sadd.s32 %s15, %s16
        %s131 = smul.u32 4, %s130
      $region20: #{focal_loss.1} parent=15 // pred_fallthru
        _
      // Predicated region
      $region21: #{focal_loss.1} parent=15 // pred_check
        %p132 = pneg %p70
      $region22: #{focal_loss.1} parent=15 // pred_check_branch
        %134 = sbr.rel (%p132) target = $region24
      $region23: #{focal_loss.1} parent=15 // pred_region
        %s135 = sadd.s32 %s15, %s16
        %p136 = scmp.lt.s32.totalorder %s135, 1
        %s137 = scalar_select %p136, %s135, 1
        %s138 = smul.addr %s137, 8
        %s139 = scalar_lea.vmem %s1, %s138
        %s140 = sadd.s32 %s15, %s16
      $region24: #{focal_loss.1} parent=15 // pred_fallthru
        _
    $region16: #{focal_loss.1} parent=5 // pred_fallthru
      _
    %p141 = scmp.le.s32.totalorder 1, %s8
    %p142 = scmp.lt.s32.totalorder %s8, 3
    %p143 = pnand %p141, %p142
    %p144 = pneg %p143
    // Predicated region
    $region25: #{focal_loss.1} parent=5 // pred_check
      _
    $region26: #{focal_loss.1} parent=5 // pred_check_branch
      %146 = sbr.rel (%p143) target = $region28
    $region27: #{focal_loss.1} parent=5 // pred_region
      %s147 = ssub.s32 %s8, 1
      %s148 = sadd.s32 %s17, %s18
      %s149 = smul.u32 4, %s148
      %p150 = scmp.lt.s32.totalorder %s149, 7
      %s151 = scalar_select %p150, %s149, 7
      %s152 = smul.addr %s151, 8
      %s153 = scalar_lea.vmem %s0, %s152
      %p154 = pneg %p48
      %p155 = pneg %p45
      %s156 = sadd.s32 %s17, %s18
      %p157 = scmp.lt.s32.totalorder %s156, 1
      %s158 = scalar_select %p157, %s156, 1
      %s159 = smul.addr %s158, 8
      %s160 = scalar_lea.vmem %s1, %s159
      %p161 = pneg %p76
      %p162 = pneg %p73
      %p163 = pneg %p102
      %p164 = pneg %p99
      %p165 = scmp.lt.s32.totalorder %s17, 1
      %s166 = scalar_select %p165, %s17, 1
      %s167 = smul.addr %s166, 8
      %s168 = scalar_lea.vmem %s2, %s167
      %s169 = sadd.s32 %s17, %s18
      %s170 = smul.u32 4, %s169
      %p171 = scmp.lt.s32.totalorder %s170, 7
      %s172 = scalar_select %p171, %s170, 7
      %s173 = smul.addr %s172, 8
      %s174 = scalar_lea.vmem %s0, %s173
      %s175 = sadd.s32 %s17, %s18
      %s176 = smul.u32 4, %s175
      %s177 = sadd.s32 %s17, %s18
      %p178 = scmp.lt.s32.totalorder %s177, 1
      %s179 = scalar_select %p178, %s177, 1
      %s180 = smul.addr %s179, 8
      %s181 = scalar_lea.vmem %s1, %s180
      %s182 = sadd.s32 %s17, %s18
      %p183 = scmp.lt.s32.totalorder %s17, 1
      %s184 = scalar_select %p183, %s17, 1
      %s185 = smul.addr %s184, 8
      %s186 = scalar_lea.vmem %s2, %s185
      %p187 = scmp.eq.s32.totalorder %s18, 0
      // Predicated region
      $region29: #{focal_loss.1} parent=27 // pred_check
        %p188 = pneg %p187
      $region30: #{focal_loss.1} parent=27 // pred_check_branch
        %190 = sbr.rel (%p188) target = $region32
      $region31: #{focal_loss.1} parent=27 // pred_region
        %191 = vst [vmem:[#allocation2] sm:$0xff] 0.0
      $region32: #{focal_loss.1} parent=27 // pred_fallthru
        _
      %v192 = vld [vmem:[%s174] sm:$0xff]
      %v193 = vld [vmem:[%s174 + $0x8] sm:$0xff]
      %v194 = vld [vmem:[%s174 + $0x10] sm:$0xff]
      %v195 = vld [vmem:[%s174 + $0x18] sm:$0xff]
      %v196 = vld [vmem:[%s181] sm:$0xff]
      %v197 = vunpack.c.0.s8 %v196
      %v198 = vunpack.c.1.s8 %v196
      %v199 = vunpack.c.2.s8 %v196
      %v200 = vunpack.c.3.s8 %v196
      %v201 = vcvt.s32.f32 %v197
      %v202 = vcvt.s32.f32 %v198
      %v203 = vcvt.s32.f32 %v199
      %v204 = vcvt.s32.f32 %v200
      %v205 = vand.u32 2147483647, %v192
      %v206 = vand.u32 2147483647, %v193
      %v207 = vand.u32 2147483647, %v194
      %v208 = vand.u32 2147483647, %v195
      %v209 = vsub.f32 0.0, %v205
      %v210 = vsub.f32 0.0, %v206
      %v211 = vsub.f32 0.0, %v207
      %v212 = vsub.f32 0.0, %v208
      %v213 = vmul.f32 %v209, 1.442695
      %v214 = vpow.pop %v213
      %v215 = vmul.f32 %v210, 1.442695
      %v216 = vpow.pop %v215
      %v217 = vmul.f32 %v211, 1.442695
      %v218 = vpow.pop %v217
      %v219 = vmul.f32 %v212, 1.442695
      %v220 = vpow.pop %v219
      %v221 = vmax.f32 %v192, 0.0
      %v222 = vmax.f32 %v193, 0.0
      %v223 = vmax.f32 %v194, 0.0
      %v224 = vmax.f32 %v195, 0.0
      %v225 = vmul.f32 %v192, %v201
      %v226 = vmul.f32 %v193, %v202
      %v227 = vmul.f32 %v194, %v203
      %v228 = vmul.f32 %v195, %v204
      %v229 = vsub.f32 %v221, %v225
      %v230 = vsub.f32 %v222, %v226
      %v231 = vsub.f32 %v223, %v227
      %v232 = vsub.f32 %v224, %v228
      %v233 = vadd.f32 %v214, 1.0
      %v234 = vlog2.pop %v233
      %v235 = vmul.f32 %v234, 0.6931472
      %v236 = vmul.f32 -0.5, %v214
      %v237 = vadd.f32 %v236, 1.0
      %v238 = vmul.f32 %v237, %v214
      %v239 = vand.u32 2147483647, %v214
      %vm240 = vcmp.lt.f32.partialorder %v239, 0.0004427343
      %v241 = vsel %vm240, %v238, %v235
      %v242 = vadd.f32 %v216, 1.0
      %v243 = vlog2.pop %v242
      %v244 = vmul.f32 %v243, 0.6931472
      %v245 = vmul.f32 -0.5, %v216
      %v246 = vadd.f32 %v245, 1.0
      %v247 = vmul.f32 %v246, %v216
      %v248 = vand.u32 2147483647, %v216
      %vm249 = vcmp.lt.f32.partialorder %v248, 0.0004427343
      %v250 = vsel %vm249, %v247, %v244
      %v251 = vadd.f32 %v218, 1.0
      %v252 = vlog2.pop %v251
      %v253 = vmul.f32 %v252, 0.6931472
      %v254 = vmul.f32 -0.5, %v218
      %v255 = vadd.f32 %v254, 1.0
      %v256 = vmul.f32 %v255, %v218
      %v257 = vand.u32 2147483647, %v218
      %vm258 = vcmp.lt.f32.partialorder %v257, 0.0004427343
      %v259 = vsel %vm258, %v256, %v253
      %v260 = vadd.f32 %v220, 1.0
      %v261 = vlog2.pop %v260
      %v262 = vmul.f32 %v261, 0.6931472
      %v263 = vmul.f32 -0.5, %v220
      %v264 = vadd.f32 %v263, 1.0
      %v265 = vmul.f32 %v264, %v220
      %v266 = vand.u32 2147483647, %v220
      %vm267 = vcmp.lt.f32.partialorder %v266, 0.0004427343
      %v268 = vsel %vm267, %v265, %v262
      %v269 = vadd.f32 %v229, %v241
      %v270 = vadd.f32 %v230, %v250
      %v271 = vadd.f32 %v231, %v259
      %v272 = vadd.f32 %v232, %v268
      %vm273 = vcmp.ge.f32.partialorder %v192, 0.0
      %vm274 = vcmp.ge.f32.partialorder %v193, 0.0
      %vm275 = vcmp.ge.f32.partialorder %v194, 0.0
      %vm276 = vcmp.ge.f32.partialorder %v195, 0.0
      %vm277 = vcmp.gt.f32.partialorder %v201, 0.5
      %vm278 = vcmp.gt.f32.partialorder %v202, 0.5
      %vm279 = vcmp.gt.f32.partialorder %v203, 0.5
      %vm280 = vcmp.gt.f32.partialorder %v204, 0.5
      %vm281 = vmxor %vm273, %vm277
      %vm282 = vmxor %vm274, %vm278
      %vm283 = vmxor %vm275, %vm279
      %vm284 = vmxor %vm276, %vm280
      %v285 = vadd.f32 %v214, 1.0
      %v286 = vadd.f32 %v216, 1.0
      %v287 = vadd.f32 %v218, 1.0
      %v288 = vadd.f32 %v220, 1.0
      %v289 = vrcp.pop %v285
      %v290 = vrcp.pop %v286
      %v291 = vrcp.pop %v287
      %v292 = vrcp.pop %v288
      %v293 = vsel %vm281, 1.0, %v214
      %v294 = vsel %vm282, 1.0, %v216
      %v295 = vsel %vm283, 1.0, %v218
      %v296 = vsel %vm284, 1.0, %v220
      %v297 = vmul.f32 %v293, %v289
      %v298 = vmul.f32 %v294, %v290
      %v299 = vmul.f32 %v295, %v291
      %v300 = vmul.f32 %v296, %v292
      %v301 = vmul.f32 %v201, -0.5
      %v302 = vmul.f32 %v202, -0.5
      %v303 = vmul.f32 %v203, -0.5
      %v304 = vmul.f32 %v204, -0.5
      %v305 = vadd.f32 %v301, 0.75
      %v306 = vadd.f32 %v302, 0.75
      %v307 = vadd.f32 %v303, 0.75
      %v308 = vadd.f32 %v304, 0.75
      %v309 = vmul.f32 %v297, %v297
      %v310 = vmul.f32 %v298, %v298
      %v311 = vmul.f32 %v299, %v299
      %v312 = vmul.f32 %v300, %v300
      %v313 = vmul.f32 %v305, %v309
      %v314 = vmul.f32 %v306, %v310
      %v315 = vmul.f32 %v307, %v311
      %v316 = vmul.f32 %v308, %v312
      %v317 = vmul.f32 %v313, %v269
      %v318 = vmul.f32 %v314, %v270
      %v319 = vmul.f32 %v315, %v271
      %v320 = vmul.f32 %v316, %v272
      %v321 = vld [vmem:[#allocation2] sm:$0xff]
      %v322 = vadd.f32 %v317, %v318
      %v323 = vadd.f32 %v322, %v319
      %v324 = vadd.f32 %v323, %v320
      %v325 = vadd.f32 %v321, %v324
      %326 = vst [vmem:[#allocation2] sm:$0xff] %v325
      // Predicated region
      $region33: #{focal_loss.1} parent=27 // pred_check
        %p327 = pneg %p187
      $region34: #{focal_loss.1} parent=27 // pred_check_branch
        %329 = sbr.rel (%p327) target = $region36
      $region35: #{focal_loss.1} parent=27 // pred_region
        %v330 = vld [vmem:[#allocation2] sm:$0xff]
        %331 = vst [vmem:[%s186] sm:$0xff] %v330
      $region36: #{focal_loss.1} parent=27 // pred_fallthru
        _
      %p332 = scmp.lt.s32.totalorder %s17, 1
      %s333 = scalar_select %p332, %s17, 1
      %s334 = smul.addr %s333, 8
      %s335 = scalar_lea.vmem %s2, %s334
      // Predicated region
      $region37: #{focal_loss.1} parent=27 // pred_check
        %p336 = pneg %p99
      $region38: #{focal_loss.1} parent=27 // pred_check_branch
        %338 = sbr.rel (%p336) target = $region40
      $region39: #{focal_loss.1} parent=27 // pred_region
        _
      $region40: #{focal_loss.1} parent=27 // pred_fallthru
        _
    $region28: #{focal_loss.1} parent=5 // pred_fallthru
      _
    %p339 = scmp.le.s32.totalorder 2, %s8
    // Predicated region
    $region41: #{focal_loss.1} parent=5 // pred_check
      %p340 = pneg %p339
    $region42: #{focal_loss.1} parent=5 // pred_check_branch
      %342 = sbr.rel (%p340) target = $region44
    $region43: #{focal_loss.1} parent=5 // pred_region
      %s343 = ssub.s32 %s8, 2
      // Predicated region
      $region45: #{focal_loss.1} parent=43 // pred_check
        %p344 = pneg %p105
      $region46: #{focal_loss.1} parent=43 // pred_check_branch
        %346 = sbr.rel (%p344) target = $region48
      $region47: #{focal_loss.1} parent=43 // pred_region
        %p347 = scmp.lt.s32.totalorder %s19, 1
        %s348 = scalar_select %p347, %s19, 1
        %s349 = smul.addr %s348, 8
        %s350 = scalar_lea.vmem %s2, %s349
      $region48: #{focal_loss.1} parent=43 // pred_fallthru
        _
    $region44: #{focal_loss.1} parent=5 // pred_fallthru
      _
  $region6: #{focal_loss.1} parent=0 // loop_footer
    %s12 = sadd.s32 1, %s8
  $region7: #{focal_loss.1} parent=0 // loop_footer_branch
    %7 = sbr.rel target = $region3
  $region8: #{focal_loss.1} parent=0 // loop_exit
    _

</llo_original>
